<compile_context>
chip_gen: v7x
topology: tpu7x:2x2x1
jax: 0.10.0
libtpu: 0.0.40
codegen_flags: <defaults>
</compile_context>

<pallas_src>
import functools

import jax
import jax.numpy as jnp
from jax.experimental import pallas as pl
from jax.experimental.pallas import tpu as pltpu


_VMEM_LIMIT_BYTES = 48 * 1024 * 1024    # explicit scoped-VMEM cap (fits v7x's 64 MiB)
_VMEM_BUDGET_BYTES = 32 * 1024 * 1024   # per-step working-set target for tile picking


# ----------------------------------------------------------------------------
# Pallas kernel: separable bilinear resize of one channel tile.
# ----------------------------------------------------------------------------
def _resize_kernel(wh_ref, img_ref, wwt_ref, out_ref, *, cols_first):
    """out = Wh @ img @ Ww^T with bf16 MXU inputs and f32 accumulation."""
    img = img_ref[...].astype(jnp.bfloat16)        # (H, W)
    wh = wh_ref[...]                               # bf16, (th|new_h, H)
    wwt = wwt_ref[...]                             # bf16, (W, new_w|tw)
    if cols_first:
        tmp = jnp.dot(img, wwt, preferred_element_type=jnp.float32)        # (H, tw)
        out = jnp.dot(wh, tmp.astype(jnp.bfloat16),
                      preferred_element_type=jnp.float32)                  # (new_h, tw)
    else:
        tmp = jnp.dot(wh, img, preferred_element_type=jnp.float32)         # (th, W)
        out = jnp.dot(tmp.astype(jnp.bfloat16), wwt,
                      preferred_element_type=jnp.float32)                  # (th, new_w)
    if jnp.issubdtype(out_ref.dtype, jnp.integer):
        info = jnp.iinfo(out_ref.dtype)
        out = jnp.clip(jnp.round(out), info.min, info.max)
    out_ref[...] = out.astype(out_ref.dtype)


# ----------------------------------------------------------------------------
# Interpolation weights / order / tile selection helpers.
# ----------------------------------------------------------------------------
def _bilinear_weights(in_size, out_size, antialias):
    """(out, in) triangle-filter matrix, half-pixel centers, antialiased."""
    scale = in_size / out_size
    support = max(scale, 1.0) if antialias else 1.0
    centers = (jnp.arange(out_size, dtype=jnp.float32) + 0.5) * scale - 0.5
    src = jnp.arange(in_size, dtype=jnp.float32)
    w = jnp.maximum(0.0, 1.0 - jnp.abs(src[None, :] - centers[:, None]) / support)
    return w / jnp.sum(w, axis=1, keepdims=True)


def _use_cols_first(H, W, new_h, new_w):
    rows_first_flops = new_h * W * (H + new_w)     # (Wh@img) then (.@Ww^T)
    cols_first_flops = new_w * H * (W + new_h)     # (img@Ww^T) then (Wh@.)
    return cols_first_flops < rows_first_flops


def _pick_row_tile(new_h, H, W, new_w, in_b, out_b, max_tile):
    cap = max(8, (int(max_tile) // 8) * 8)
    if new_h <= cap:
        return new_h

    def fp(t):
        return (2 * t * H * 2            # wh tile (bf16, double-buffered)
                + W * new_w * 2          # wwt (bf16, single-buffered)
                + 2 * H * W * in_b       # img (double-buffered)
                + 2 * t * new_w * out_b  # out tile (double-buffered)
                + 2 * t * max(W, new_w) * 4)  # f32 intermediates

    t = cap
    while t > 8 and fp(t) > _VMEM_BUDGET_BYTES:
        t = max(8, t // 2)
    return t


def _pick_col_tile(new_w, H, W, new_h, in_b, out_b, max_tile):
    cap = max(128, (int(max_tile) // 128) * 128)
    if new_w <= cap:
        return new_w

    def fp(t):
        return (new_h * H * 2 + 2 * W * t * 2 + 2 * H * W * in_b
                + 2 * new_h * t * out_b + 2 * H * t * 4)

    t = cap
    while t > 128 and fp(t) > _VMEM_BUDGET_BYTES:
        t = max(128, t // 2)
    return t


# ----------------------------------------------------------------------------
# Pallas wrapper: (C, H, W) -> (C, new_h, new_w) bilinear resize.
# ----------------------------------------------------------------------------
def _pallas_resize(x, new_h, new_w, *, antialias=True, max_tile=256):
    C, H, W = x.shape
    wh = _bilinear_weights(H, new_h, antialias).astype(jnp.bfloat16)       # (new_h, H)
    wwt = _bilinear_weights(W, new_w, antialias).T.astype(jnp.bfloat16)    # (W, new_w)

    cols_first = _use_cols_first(H, W, new_h, new_w)
    in_b = x.dtype.itemsize
    out_b = x.dtype.itemsize

    if cols_first:
        t = _pick_col_tile(new_w, H, W, new_h, in_b, out_b, max_tile)
        grid = (C, pl.cdiv(new_w, t))
    else:
        t = _pick_row_tile(new_h, H, W, new_w, in_b, out_b, max_tile)
        grid = (C, pl.cdiv(new_h, t))

    def call(single_buffer_const):
        def const_spec(shape, index_map):
            if single_buffer_const:
                return pl.BlockSpec(shape, index_map, pipeline_mode=pl.Buffered(1))
            return pl.BlockSpec(shape, index_map)

        img_spec = pl.BlockSpec((None, H, W), lambda c, i: (c, 0, 0))
        if cols_first:
            wh_spec = const_spec((new_h, H), lambda c, j: (0, 0))
            wwt_spec = pl.BlockSpec((W, t), lambda c, j: (0, j))
            out_spec = pl.BlockSpec((None, new_h, t), lambda c, j: (c, 0, j))
        else:
            wh_spec = pl.BlockSpec((t, H), lambda c, i: (i, 0))
            wwt_spec = const_spec((W, new_w), lambda c, i: (0, 0))
            out_spec = pl.BlockSpec((None, t, new_w), lambda c, i: (c, i, 0))

        return pl.pallas_call(
            functools.partial(_resize_kernel, cols_first=cols_first),
            out_shape=jax.ShapeDtypeStruct((C, new_h, new_w), x.dtype),
            grid=grid,
            in_specs=[wh_spec, img_spec, wwt_spec],
            out_specs=out_spec,
            compiler_params=pltpu.CompilerParams(
                dimension_semantics=("parallel", "parallel"),
                vmem_limit_bytes=_VMEM_LIMIT_BYTES,
            ),
        )(wh, x, wwt)

    try:
        return call(True)
    except Exception:
        # Fallback if pipeline_mode=pl.Buffered(1) is unsupported in this jax
        # build (costs only VMEM, not correctness).
        return call(False)


# ----------------------------------------------------------------------------
# Plain-JAX pieces (per perf review: no kernel-worthy compute in these).
# ----------------------------------------------------------------------------
def _nearest_resize(x, new_h, new_w):
    """Nearest-neighbour resize: src = floor(dst * in/out). Pure static gather,
    kept in plain JAX (uint8 end-to-end, no MXU/VPU work)."""
    _, H, W = x.shape
    ridx = jnp.clip(jnp.floor(jnp.arange(new_h, dtype=jnp.float32) * (H / new_h)),
                    0, H - 1).astype(jnp.int32)
    cidx = jnp.clip(jnp.floor(jnp.arange(new_w, dtype=jnp.float32) * (W / new_w)),
                    0, W - 1).astype(jnp.int32)
    return x[:, ridx][:, :, cidx]


def _scale_boxes(boxes, sx, sy):
    """(N,4) xyxy boxes: x-coords * sx, y-coords * sy (plain JAX; XLA fuses it)."""
    scale = jnp.array([sx, sy, sx, sy], dtype=boxes.dtype)
    return boxes * scale[None, :]


# ----------------------------------------------------------------------------
# Module
# ----------------------------------------------------------------------------
class ScaleJitter:
    """Pallas port of the ScaleJitter (Large Scale Jitter) transform."""

    def __init__(self, target_size, scale_range=(0.1, 2.0),
                 interpolation="bilinear", antialias=True):
        self.target_size = tuple(target_size)
        self.scale_range = tuple(scale_range)
        self.interpolation = interpolation
        self.antialias = antialias

    def __call__(self, image, target=None, *, key=None):
        if image.ndim not in (2, 3):
            raise ValueError(
                f"image should be 2/3 dimensional. Got {image.ndim} dimensions.")
        if image.ndim == 2:
            image = image[None]
        _, orig_h, orig_w = image.shape

        if key is None:
            key = jax.random.PRNGKey(0)
        # Random scale drawn eagerly (like torch.rand) so output shapes are static.
        u = float(jax.random.uniform(key, ()))
        scale = self.scale_range[0] + u * (self.scale_range[1] - self.scale_range[0])
        r = min(self.target_size[1] / orig_h, self.target_size[0] / orig_w) * scale
        new_w = max(1, int(orig_w * r))
        new_h = max(1, int(orig_h * r))

        if self.interpolation == "nearest":
            image = _nearest_resize(image, new_h, new_w)
        else:
            image = _pallas_resize(image, new_h, new_w, antialias=self.antialias)

        if target is not None:
            target = dict(target)
            target["boxes"] = _scale_boxes(
                target["boxes"], new_w / orig_w, new_h / orig_h)
            if "masks" in target:
                target["masks"] = _nearest_resize(target["masks"], new_h, new_w)
        return image, target


# ----------------------------------------------------------------------------
# Demo / correctness check
# ----------------------------------------------------------------------------
if __name__ == "__main__":
    root = jax.random.PRNGKey(0)
    k_img, k_boxes, k_masks, k_scale, k_a, k_b = jax.random.split(root, 6)

    def ref_bilinear(x, new_h, new_w, antialias=True):
        # Pure-jnp reference mirroring the kernel math (bf16 inputs, f32 accum).
        _, H, W = x.shape
        wh = _bilinear_weights(H, new_h, antialias).astype(jnp.bfloat16).astype(jnp.float32)
        ww = _bilinear_weights(W, new_w, antialias).astype(jnp.bfloat16).astype(jnp.float32)
        xb = x.astype(jnp.bfloat16).astype(jnp.float32)
        if _use_cols_first(H, W, new_h, new_w):
            tmp = jnp.einsum("chw,xw->chx", xb, ww)
            tmp = tmp.astype(jnp.bfloat16).astype(jnp.float32)
            out = jnp.einsum("yh,chx->cyx", wh, tmp)
        else:
            tmp = jnp.einsum("yh,chw->cyw", wh, xb)
            tmp = tmp.astype(jnp.bfloat16).astype(jnp.float32)
            out = jnp.einsum("cyw,xw->cyx", tmp, ww)
        return out.astype(x.dtype)

    # ---------------- main transform ----------------
    C, H, W = 3, 16, 16
    image = jax.random.uniform(k_img, (C, H, W), dtype=jnp.float32)
    boxes = jax.random.uniform(k_boxes, (8, 4), dtype=jnp.float32) * 16.0
    masks = (jax.random.uniform(k_masks, (2, H, W)) > 0.5).astype(jnp.uint8)
    target = {"boxes": boxes, "masks": masks}

    sj = ScaleJitter(target_size=(32, 32), scale_range=(0.1, 2.0),
                     interpolation="bilinear", antialias=True)
    out_img, out_tgt = sj(image, target, key=k_scale)
    out_img = jax.block_until_ready(out_img)
    out_boxes = jax.block_until_ready(out_tgt["boxes"])
    out_masks = jax.block_until_ready(out_tgt["masks"])
    new_h, new_w = out_img.shape[1], out_img.shape[2]

    assert out_img.shape == (C, new_h, new_w) and out_img.dtype == jnp.float32
    assert jnp.allclose(out_img, ref_bilinear(image, new_h, new_w),
                        atol=2e-3, rtol=2e-3)

    # masks: independent one-hot-matmul reference (nearest is exact).
    ridx = jnp.clip(jnp.floor(jnp.arange(new_h, dtype=jnp.float32) * (H / new_h)),
                    0, H - 1).astype(jnp.int32)
    cidx = jnp.clip(jnp.floor(jnp.arange(new_w, dtype=jnp.float32) * (W / new_w)),
                    0, W - 1).astype(jnp.int32)
    oh_r = jax.nn.one_hot(ridx, H, dtype=jnp.float32)
    oh_c = jax.nn.one_hot(cidx, W, dtype=jnp.float32)
    ref_m = jnp.einsum("yh,nhw,xw->nyx", oh_r, masks.astype(jnp.float32), oh_c)
    ref_m = jnp.round(ref_m).astype(jnp.uint8)
    assert out_masks.shape == (2, new_h, new_w) and out_masks.dtype == jnp.uint8
    assert jnp.array_equal(out_masks, ref_m)

    sx, sy = new_w / W, new_h / H
    ref_boxes = boxes * jnp.array([sx, sy, sx, sy], dtype=jnp.float32)[None, :]
    assert jnp.allclose(out_boxes, ref_boxes, atol=1e-5, rtol=1e-5)

    # ---------------- extra coverage: row-tiled rows-first path ----------------
    xa = jax.random.uniform(k_a, (3, 40, 24), dtype=jnp.float32)
    assert not _use_cols_first(40, 24, 100, 60)
    ya = jax.block_until_ready(_pallas_resize(xa, 100, 60, max_tile=16))
    assert jnp.allclose(ya, ref_bilinear(xa, 100, 60), atol=2e-3, rtol=2e-3)

    # ---------------- extra coverage: heavy-downscale cols-first path ----------
    xb2 = jax.random.uniform(k_b, (3, 32, 16), dtype=jnp.float32)
    assert _use_cols_first(32, 16, 8, 4)
    yb = jax.block_until_ready(_pallas_resize(xb2, 8, 4))
    assert jnp.allclose(yb, ref_bilinear(xb2, 8, 4), atol=2e-3, rtol=2e-3)

    print("KERNEL_OK")
</pallas_src>

<mosaic_0001>
module attributes {stable_mosaic.version = 11 : i64} {
  func.func @_resize_kernel(%arg0: i32, %arg1: i32, %arg2: memref<19x16xbf16, #tpu.memory_space<vmem>>, %arg3: memref<1x16x16xf32, #tpu.memory_space<vmem>>, %arg4: memref<16x19xbf16, #tpu.memory_space<vmem>>, %arg5: memref<1x19x19xf32, #tpu.memory_space<vmem>>) attributes {dimension_semantics = [#tpu.dimension_semantics<parallel>, #tpu.dimension_semantics<parallel>], iteration_bounds = array<i64: 3, 1>, scalar_prefetch = 0 : i64, scratch_operands = 0 : i64, tpu.core_type = #tpu.core_type<tc>, window_params = [{transform_indices = @transform_0, window_bounds = array<i64: 19, 16>}, {transform_indices = @transform_1, window_bounds = array<i64: 1, 16, 16>}, {pipeline_mode = #tpu.pipeline_mode<synchronous>, transform_indices = @transform_2, window_bounds = array<i64: 16, 19>}, {transform_indices = @transform_3, window_bounds = array<i64: 1, 19, 19>}]} {
    %c0 = arith.constant 0 : index
    %c0_0 = arith.constant 0 : index
    %c0_1 = arith.constant 0 : index
    %0 = vector.load %arg3[%c0, %c0_0, %c0_1] : memref<1x16x16xf32, #tpu.memory_space<vmem>>, vector<1x16x16xf32>
    %1 = vector.shape_cast %0 : vector<1x16x16xf32> to vector<16x16xf32>
    %2 = arith.truncf %1 : vector<16x16xf32> to vector<16x16xbf16>
    %c0_2 = arith.constant 0 : index
    %c0_3 = arith.constant 0 : index
    %3 = vector.load %arg2[%c0_2, %c0_3] : memref<19x16xbf16, #tpu.memory_space<vmem>>, vector<19x16xbf16>
    %c0_4 = arith.constant 0 : index
    %c0_5 = arith.constant 0 : index
    %4 = vector.load %arg4[%c0_4, %c0_5] : memref<16x19xbf16, #tpu.memory_space<vmem>>, vector<16x19xbf16>
    %cst = arith.constant dense<0.000000e+00> : vector<19x16xf32>
    %5 = tpu.matmul %3, %2, %cst {dimension_numbers = #tpu.dot_dimension_numbers<[1], [0], [0], [1], [0, 0, 1, 1], [], []>} : vector<19x16xbf16>, vector<16x16xbf16>, vector<19x16xf32> -> vector<19x16xf32>
    %6 = arith.truncf %5 : vector<19x16xf32> to vector<19x16xbf16>
    %cst_6 = arith.constant dense<0.000000e+00> : vector<19x19xf32>
    %7 = tpu.matmul %6, %4, %cst_6 {dimension_numbers = #tpu.dot_dimension_numbers<[1], [0], [0], [1], [0, 0, 1, 1], [], []>} : vector<19x16xbf16>, vector<16x19xbf16>, vector<19x19xf32> -> vector<19x19xf32>
    %c0_7 = arith.constant 0 : index
    %c0_8 = arith.constant 0 : index
    %c0_9 = arith.constant 0 : index
    %8 = vector.load %arg5[%c0_7, %c0_8, %c0_9] : memref<1x19x19xf32, #tpu.memory_space<vmem>>, vector<1x19x19xf32>
    %9 = vector.shape_cast %8 : vector<1x19x19xf32> to vector<19x19xf32>
    %10 = vector.shape_cast %7 : vector<19x19xf32> to vector<1x19x19xf32>
    tpu.vector_store %arg5[%c0_7, %c0_8, %c0_9], %10 {strides = array<i32>} : memref<1x19x19xf32, #tpu.memory_space<vmem>>, vector<1x19x19xf32>,
    return
  }
  func.func @transform_0(%arg0: i32, %arg1: i32) -> (i32, i32) {
    %c0_i32 = arith.constant 0 : i32
    %c0_i32_0 = arith.constant 0 : i32
    return %arg1, %c0_i32 : i32, i32
  }
  func.func @transform_1(%arg0: i32, %arg1: i32) -> (i32, i32, i32) {
    %c0_i32 = arith.constant 0 : i32
    %c0_i32_0 = arith.constant 0 : i32
    %c0_i32_1 = arith.constant 0 : i32
    return %arg0, %c0_i32, %c0_i32_0 : i32, i32, i32
  }
  func.func @transform_2(%arg0: i32, %arg1: i32) -> (i32, i32) {
    %c0_i32 = arith.constant 0 : i32
    %c0_i32_0 = arith.constant 0 : i32
    %c0_i32_1 = arith.constant 0 : i32
    return %c0_i32, %c0_i32_0 : i32, i32
  }
  func.func @transform_3(%arg0: i32, %arg1: i32) -> (i32, i32, i32) {
    %c0_i32 = arith.constant 0 : i32
    %c0_i32_0 = arith.constant 0 : i32
    return %arg0, %arg1, %c0_i32 : i32, i32, i32
  }
}

module attributes {stable_mosaic.version = 11 : i64} {
  func.func @_resize_kernel(%arg0: i32, %arg1: i32, %arg2: memref<19x16xbf16, #tpu.memory_space<vmem>>, %arg3: memref<1x16x16xf32, #tpu.memory_space<vmem>>, %arg4: memref<16x19xbf16, #tpu.memory_space<vmem>>, %arg5: memref<1x19x19xf32, #tpu.memory_space<vmem>>) attributes {dimension_semantics = [#tpu.dimension_semantics<parallel>, #tpu.dimension_semantics<parallel>], iteration_bounds = array<i64: 3, 1>, scalar_prefetch = 0 : i64, scratch_operands = 0 : i64, tpu.core_type = #tpu.core_type<tc>, window_params = [{transform_indices = @transform_0, window_bounds = array<i64: 19, 16>}, {transform_indices = @transform_1, window_bounds = array<i64: 1, 16, 16>}, {pipeline_mode = #tpu.pipeline_mode<synchronous>, transform_indices = @transform_2, window_bounds = array<i64: 16, 19>}, {transform_indices = @transform_3, window_bounds = array<i64: 1, 19, 19>}]} {
    %c0 = arith.constant 0 : index
    %c0_0 = arith.constant 0 : index
    %c0_1 = arith.constant 0 : index
    %0 = vector.load %arg3[%c0, %c0_0, %c0_1] : memref<1x16x16xf32, #tpu.memory_space<vmem>>, vector<1x16x16xf32>
    %1 = vector.shape_cast %0 : vector<1x16x16xf32> to vector<16x16xf32>
    %2 = arith.truncf %1 : vector<16x16xf32> to vector<16x16xbf16>
    %c0_2 = arith.constant 0 : index
    %c0_3 = arith.constant 0 : index
    %3 = vector.load %arg2[%c0_2, %c0_3] : memref<19x16xbf16, #tpu.memory_space<vmem>>, vector<19x16xbf16>
    %c0_4 = arith.constant 0 : index
    %c0_5 = arith.constant 0 : index
    %4 = vector.load %arg4[%c0_4, %c0_5] : memref<16x19xbf16, #tpu.memory_space<vmem>>, vector<16x19xbf16>
    %cst = arith.constant dense<0.000000e+00> : vector<19x16xf32>
    %5 = tpu.matmul %3, %2, %cst {dimension_numbers = #tpu.dot_dimension_numbers<[1], [0], [0], [1], [0, 0, 1, 1], [], []>} : vector<19x16xbf16>, vector<16x16xbf16>, vector<19x16xf32> -> vector<19x16xf32>
    %6 = arith.truncf %5 : vector<19x16xf32> to vector<19x16xbf16>
    %cst_6 = arith.constant dense<0.000000e+00> : vector<19x19xf32>
    %7 = tpu.matmul %6, %4, %cst_6 {dimension_numbers = #tpu.dot_dimension_numbers<[1], [0], [0], [1], [0, 0, 1, 1], [], []>} : vector<19x16xbf16>, vector<16x19xbf16>, vector<19x19xf32> -> vector<19x19xf32>
    %c0_7 = arith.constant 0 : index
    %c0_8 = arith.constant 0 : index
    %c0_9 = arith.constant 0 : index
    %8 = vector.load %arg5[%c0_7, %c0_8, %c0_9] : memref<1x19x19xf32, #tpu.memory_space<vmem>>, vector<1x19x19xf32>
    %9 = vector.shape_cast %8 : vector<1x19x19xf32> to vector<19x19xf32>
    %10 = vector.shape_cast %7 : vector<19x19xf32> to vector<1x19x19xf32>
    tpu.vector_store %arg5[%c0_7, %c0_8, %c0_9], %10 {strides = array<i32>} : memref<1x19x19xf32, #tpu.memory_space<vmem>>, vector<1x19x19xf32>,
    return
  }
  func.func @transform_0(%arg0: i32, %arg1: i32) -> (i32, i32) {
    %c0_i32 = arith.constant 0 : i32
    %c0_i32_0 = arith.constant 0 : i32
    return %arg1, %c0_i32 : i32, i32
  }
  func.func @transform_1(%arg0: i32, %arg1: i32) -> (i32, i32, i32) {
    %c0_i32 = arith.constant 0 : i32
    %c0_i32_0 = arith.constant 0 : i32
    %c0_i32_1 = arith.constant 0 : i32
    return %arg0, %c0_i32, %c0_i32_0 : i32, i32, i32
  }
  func.func @transform_2(%arg0: i32, %arg1: i32) -> (i32, i32) {
    %c0_i32 = arith.constant 0 : i32
    %c0_i32_0 = arith.constant 0 : i32
    %c0_i32_1 = arith.constant 0 : i32
    return %c0_i32, %c0_i32_0 : i32, i32
  }
  func.func @transform_3(%arg0: i32, %arg1: i32) -> (i32, i32, i32) {
    %c0_i32 = arith.constant 0 : i32
    %c0_i32_0 = arith.constant 0 : i32
    return %arg0, %arg1, %c0_i32 : i32, i32, i32
  }
}

</mosaic_0001>

<llo_original>
// kernel: tpu_custom_call.1
$region0: #{tpu_custom_call.1}
  #allocation0 [shape = 'u32[]', space=smem, size = 0x4, offset = 0x4, fixed_abs, tag = 'smem constant byte address 0x4 - core index']
  #allocation1 [shape = 'u32[144,128]{1,0:T(1,128)}', space=vmem, size = 0x12000, scoped, tag = 'internal scratch']
  %s0 = inlined_call_operand.vmem [shape: bf16[19,16], index: 0, kind: input, shape index: {}]
  %s1 = inlined_call_operand.hbm [shape: f32[3,16,16], index: 1, kind: input, shape index: {}]
  %s2 = inlined_call_operand.vmem [shape: bf16[16,19], index: 2, kind: input, shape index: {}]
  %s3 = inlined_call_operand.hbm [shape: f32[3,19,19], index: 3, kind: output, shape index: {}]
  %s4 = sld [smem:[#allocation0]]
  $region49: #{tpu_custom_call.1} parent=0
    _
  %s6 = ssub.s32 1, %s4
  %s7 = scalar_select 0, %s6, %s4
  $region1: #{tpu_custom_call.1} parent=0
    #allocation2 [shape = 'u8[16384]{0}', space=vmem, size = 0x4000, scoped, tag = 'input window, operand 1']
    #allocation3 [shape = 's32[2]{0}', space=sflag, size = 0x8, scoped, tag = 'scoped memory for tpu_custom_call.1']
    #allocation4 [shape = 's32[2]{0}', space=sflag, size = 0x8, scoped, tag = 'scoped memory for tpu_custom_call.1']
    #allocation5 [shape = 'u8[24576]{0}', space=vmem, size = 0x6000, scoped, tag = 'output window, operand 0']
    %8 = vsyncpa [#allocation3], 0
    %s9 = scalar_lea.sflag [#allocation3], 1
    %10 = vsyncpa %s9, 0
    %11 = vsyncpa [#allocation4], 0
    %s12 = scalar_lea.sflag [#allocation4], 1
    %13 = vsyncpa %s12, 0
    loop: start=0, step=1, limit=5
    $region2: #{tpu_custom_call.1} parent=1 // loop_pre_header
      _
    $region3: #{tpu_custom_call.1} parent=1 // loop_header
      %s15 = sphi 0, %s19
      %p16 = scmp.ge.s32.totalorder %s15, 5
      %s22 = sphi 0, %s34
      %s23 = sphi 0, %s30
      %s24 = sphi 0, %s22
      %s25 = sphi 0, %s23
      %s26 = sphi 0, %s24
      %s27 = sphi 0, %s25
      %s37 = sphi 0, %s39
      %s40 = sphi 0, %s37
      %s41 = sphi 0, %s40
      %s57 = sphi 0, %s41
      %s63 = sphi 0, %s65
      %s66 = sphi 0, %s63
      %s67 = sphi 0, %s66
      %s83 = sphi 0, %s67
      %s87 = sphi 0, %s87
      %s89 = sphi 0, %s87
      %s90 = sphi 0, %s89
      %s104 = sphi 0, %s90
      %s112 = sphi 0, %s114
      %s115 = sphi 0, %s112
      %s116 = sphi 0, %s115
      %s132 = sphi 0, %s116
    $region4: #{tpu_custom_call.1} parent=1 // loop_header_branch
      %18 = sbr.rel (%p16) target = $region8
    $region5: #{tpu_custom_call.1} parent=1 // loop_body
      %s20 = ssub.s32 %s15, 1
      %s21 = ssub.s32 %s15, 2
      %s28 = sadd.s32 1, %s23
      %p29 = scmp.ge.s32.totalorder %s28, 1
      %s30 = scalar_select %p29, 0, %s28
      %s31 = sadd.s32 1, %s22
      %s32 = scalar_select %p29, %s31, %s22
      %p33 = scmp.ge.s32.totalorder %s32, 3
      %s34 = scalar_select %p33, 0, %s32
      %s35 = ssub.s32 %s23, %s30
      %p36 = scmp.eq.s32.totalorder %s35, 0
      %s38 = sadd.s32 %s37, 1
      %s39 = scalar_select %p36, %s37, %s38
      %p42 = pneg %p36
      %p43 = scmp.eq.s32.totalorder %s15, 2
      %p44 = por %p42, %p43
      %p45 = scmp.ne.s32.totalorder %s37, %s40
      %p46 = scmp.eq.s32.totalorder %s15, 0
      %p47 = por %p45, %p46
      %p48 = scmp.ne.s32.totalorder %s37, %s40
      %p49 = scmp.eq.s32.totalorder %s20, 2
      %p50 = por %p48, %p49
      %p51 = scmp.ne.s32.totalorder %s40, %s41
      %p52 = scmp.eq.s32.totalorder %s20, 0
      %p53 = por %p51, %p52
      %p54 = scmp.ne.s32.totalorder %s40, %s41
      %p55 = scmp.eq.s32.totalorder %s21, 2
      %p56 = por %p54, %p55
      %p58 = scmp.ne.s32.totalorder %s41, %s57
      %p59 = scmp.eq.s32.totalorder %s21, 0
      %p60 = por %p58, %p59
      %s61 = ssub.s32 %s22, %s34
      %p62 = scmp.eq.s32.totalorder %s61, 0
      %s64 = sadd.s32 %s63, 1
      %s65 = scalar_select %p62, %s63, %s64
      %p68 = pneg %p62
      %p69 = scmp.eq.s32.totalorder %s15, 2
      %p70 = por %p68, %p69
      %p71 = scmp.ne.s32.totalorder %s63, %s66
      %p72 = scmp.eq.s32.totalorder %s15, 0
      %p73 = por %p71, %p72
      %p74 = scmp.ne.s32.totalorder %s63, %s66
      %p75 = scmp.eq.s32.totalorder %s20, 2
      %p76 = por %p74, %p75
      %p77 = scmp.ne.s32.totalorder %s66, %s67
      %p78 = scmp.eq.s32.totalorder %s20, 0
      %p79 = por %p77, %p78
      %p80 = scmp.ne.s32.totalorder %s66, %s67
      %p81 = scmp.eq.s32.totalorder %s21, 2
      %p82 = por %p80, %p81
      %p84 = scmp.ne.s32.totalorder %s67, %s83
      %p85 = scmp.eq.s32.totalorder %s21, 0
      %p86 = por %p84, %p85
      %s88 = sadd.s32 %s87, 1
      %p91 = scmp.eq.s32.totalorder %s15, 2
      %p92 = scmp.ne.s32.totalorder %s87, %s89
      %p93 = scmp.eq.s32.totalorder %s15, 0
      %p94 = por %p92, %p93
      %p95 = scmp.ne.s32.totalorder %s87, %s89
      %p96 = scmp.eq.s32.totalorder %s20, 2
      %p97 = por %p95, %p96
      %p98 = scmp.ne.s32.totalorder %s89, %s90
      %p99 = scmp.eq.s32.totalorder %s20, 0
      %p100 = por %p98, %p99
      %p101 = scmp.ne.s32.totalorder %s89, %s90
      %p102 = scmp.eq.s32.totalorder %s21, 2
      %p103 = por %p101, %p102
      %p105 = scmp.ne.s32.totalorder %s90, %s104
      %p106 = scmp.eq.s32.totalorder %s21, 0
      %p107 = por %p105, %p106
      %s108 = ssub.s32 %s22, %s34
      %s109 = ssub.s32 %s23, %s30
      %s110 = sor.u32 %s108, %s109
      %p111 = scmp.eq.s32.totalorder %s110, 0
      %s113 = sadd.s32 %s112, 1
      %s114 = scalar_select %p111, %s112, %s113
      %p117 = pneg %p111
      %p118 = scmp.eq.s32.totalorder %s15, 2
      %p119 = por %p117, %p118
      %p120 = scmp.ne.s32.totalorder %s112, %s115
      %p121 = scmp.eq.s32.totalorder %s15, 0
      %p122 = por %p120, %p121
      %p123 = scmp.ne.s32.totalorder %s112, %s115
      %p124 = scmp.eq.s32.totalorder %s20, 2
      %p125 = por %p123, %p124
      %p126 = scmp.ne.s32.totalorder %s115, %s116
      %p127 = scmp.eq.s32.totalorder %s20, 0
      %p128 = por %p126, %p127
      %p129 = scmp.ne.s32.totalorder %s115, %s116
      %p130 = scmp.eq.s32.totalorder %s21, 2
      %p131 = por %p129, %p130
      %p133 = scmp.ne.s32.totalorder %s116, %s132
      %p134 = scmp.eq.s32.totalorder %s21, 0
      %p135 = por %p133, %p134
      %p136 = scmp.le.s32.totalorder 1, %s15
      %p137 = scmp.lt.s32.totalorder %s15, 4
      %p138 = pnand %p136, %p137
      %p139 = pneg %p138
      // Predicated region
      $region9: #{tpu_custom_call.1} parent=5 // pred_check
        _
      $region10: #{tpu_custom_call.1} parent=5 // pred_check_branch
        %141 = sbr.rel (%p138) target = $region12
      $region11: #{tpu_custom_call.1} parent=5 // pred_region
        %s142 = ssub.s32 %s15, 1
        // Predicated region
        $region13: #{tpu_custom_call.1} parent=11 // pred_check
          %p143 = pneg %p53
        $region14: #{tpu_custom_call.1} parent=11 // pred_check_branch
          %145 = sbr.rel (%p143) target = $region16
        $region15: #{tpu_custom_call.1} parent=11 // pred_region
          %s146 = smul.u32 3, %s25
          %p147 = scmp.lt.s32.totalorder %s146, 2
          %s148 = scalar_select %p147, %s146, 2
          %s149 = smul.addr %s148, 4
          %s150 = scalar_lea.vmem %s0, %s149
          %s151 = smul.u32 3, %s25
        $region16: #{tpu_custom_call.1} parent=11 // pred_fallthru
          _
        // Predicated region
        $region17: #{tpu_custom_call.1} parent=11 // pred_check
          %p152 = pneg %p100
        $region18: #{tpu_custom_call.1} parent=11 // pred_check_branch
          %154 = sbr.rel (%p152) target = $region20
        $region19: #{tpu_custom_call.1} parent=11 // pred_region
          _
        $region20: #{tpu_custom_call.1} parent=11 // pred_fallthru
          _
      $region12: #{tpu_custom_call.1} parent=5 // pred_fallthru
        _
      %p155 = scmp.lt.s32.totalorder %s15, 3
      // Predicated region
      $region21: #{tpu_custom_call.1} parent=5 // pred_check
        %p156 = pneg %p155
      $region22: #{tpu_custom_call.1} parent=5 // pred_check_branch
        %158 = sbr.rel (%p156) target = $region24
      $region23: #{tpu_custom_call.1} parent=5 // pred_region
        // Predicated region
        $region25: #{tpu_custom_call.1} parent=23 // pred_check
          %p159 = pneg %p73
        $region26: #{tpu_custom_call.1} parent=23 // pred_check_branch
          %161 = sbr.rel (%p159) target = $region28
        $region27: #{tpu_custom_call.1} parent=23 // pred_region
          %s162 = sand.u32 %s63, 1
          %s163 = scalar_lea.sflag [#allocation3], %s162
          %s164 = sand.u32 %s63, 1
          %s165 = smul.addr %s164, 16
          %s166 = scalar_lea.vmem [#allocation2], %s165
          %s168 = ssub.s32 256, 256
          %169 = vsyncadd %s163, %s168
          %s170 = smul.addr %s22, 2
          %s171 = smul.addr %s170, 128
          %s172 = scalar_lea.hbm %s1, %s171
          %s173 = sshll.u32 %s166, 4
          %s174 = int_to_ptr.vmem [resolvable:$true] %s173
          %179 = dma.hbm_to_vmem [thread:$0]  %s172, 256, %s174, %s163, 128, 128, 8
        $region28: #{tpu_custom_call.1} parent=23 // pred_fallthru
          _
      $region24: #{tpu_custom_call.1} parent=5 // pred_fallthru
        _
      %p180 = scmp.le.s32.totalorder 1, %s15
      %p181 = scmp.lt.s32.totalorder %s15, 4
      %p182 = pnand %p180, %p181
      %p183 = pneg %p182
      // Predicated region
      $region29: #{tpu_custom_call.1} parent=5 // pred_check
        _
      $region30: #{tpu_custom_call.1} parent=5 // pred_check_branch
        %185 = sbr.rel (%p182) target = $region32
      $region31: #{tpu_custom_call.1} parent=5 // pred_region
        %s186 = ssub.s32 %s15, 1
        %s187 = sand.u32 %s66, 1
        %s188 = scalar_lea.sflag [#allocation3], %s187
        %s189 = sand.u32 %s66, 1
        %s190 = smul.addr %s189, 16
        %s191 = scalar_lea.vmem [#allocation2], %s190
        // Predicated region
        $region33: #{tpu_custom_call.1} parent=31 // pred_check
          %p192 = pneg %p79
        $region34: #{tpu_custom_call.1} parent=31 // pred_check_branch
          %194 = sbr.rel (%p192) target = $region36
        $region35: #{tpu_custom_call.1} parent=31 // pred_region
          %195 = dma.done %s188, 256
        $region36: #{tpu_custom_call.1} parent=31 // pred_fallthru
          _
        %s196 = smul.u32 3, %s25
        %p197 = scmp.lt.s32.totalorder %s196, 2
        %s198 = scalar_select %p197, %s196, 2
        %s199 = smul.addr %s198, 4
        %s200 = scalar_lea.vmem %s0, %s199
        %p201 = pneg %p53
        %p202 = pneg %p50
        %s203 = sand.u32 %s66, 1
        %s204 = scalar_lea.sflag [#allocation3], %s203
        %s205 = sand.u32 %s66, 1
        %s206 = smul.addr %s205, 16
        %s207 = scalar_lea.vmem [#allocation2], %s206
        %p208 = pneg %p79
        %p209 = pneg %p76
        %p210 = pneg %p100
        %p211 = pneg %p97
        %p212 = pneg %p128
        %p213 = pneg %p125
        %s214 = sand.u32 %s115, 1
        %s215 = scalar_lea.sflag [#allocation4], %s214
        %s216 = sand.u32 %s115, 1
        %s217 = smul.addr %s216, 24
        %s218 = scalar_lea.vmem [#allocation5], %s217
        %s219 = smul.u32 3, %s25
        %p220 = scmp.lt.s32.totalorder %s219, 2
        %s221 = scalar_select %p220, %s219, 2
        %s222 = smul.addr %s221, 4
        %s223 = scalar_lea.vmem %s0, %s222
        %s224 = smul.u32 3, %s25
        %s225 = smul.u32 3, %s25
        %v227 = vld [vmem:[%s191] sm:$0xff]
        %v228 = vld [vmem:[%s191 + $0x8] sm:$0xff]
        %v229 = vpack.c.bf16 %v228, %v227
        %v230 = vld [vmem:[%s223] sm:$0xf]
        %v231 = vld [vmem:[%s223 + $0x4] sm:$0xf]
        %v232 = vld [vmem:[%s223 + $0x8] sm:$0x3]
        %v233 = vld [vmem:[%s2] sm:$0xf]
        %v234 = vld [vmem:[%s2 + $0x4] sm:$0xf]
        %v238 = vunpack.c.l.b16 %v230
        %v239 = vunpack.c.l.b16 %v231
        %v240 = vunpack.c.l.b16 %v232
        %v241 = vpack.c.b16 %v239, %v238
        %v242 = vpack.c.b16 %v240, %v240
        %vm243 = vcmask 130048
        %v245 = vsel %vm243, %v241, 0
        %v248 = vsel %vm243, %v242, 0
        %250 = vmatprep.subr.bf16.mxu0 0
        %251 = vmatpush1.bf16.msra.mxu0 %v229
        %252 = vmatprep.subr.bf16.mxu0 0
        %253 = vmatpush1.bf16.msra.mxu0 0
        %254 = vmatprep.subr.bf16.mxu0 0
        %255 = vmatpush1.bf16.msra.mxu0 0
        %256 = vmatprep.subr.bf16.mxu0 0
        %257 = vmatpush1.bf16.msra.mxu0 0
        %258 = vmatprep.subr.bf16.mxu0 0
        %259 = vmatpush1.bf16.msra.mxu0 0
        %260 = vmatprep.subr.bf16.mxu0 0
        %261 = vmatpush1.bf16.msra.mxu0 0
        %262 = vmatprep.subr.bf16.mxu0 0
        %263 = vmatpush1.bf16.msra.mxu0 0
        %264 = vmatprep.subr.bf16.mxu0 0
        %265 = vmatpush1.bf16.msra.mxu0 0
        %266 = vmatprep.subr.bf16.mxu0 0
        %267 = vmatpush1.bf16.msra.mxu0 0
        %268 = vmatprep.subr.bf16.mxu0 0
        %269 = vmatpush1.bf16.msra.mxu0 0
        %270 = vmatprep.subr.bf16.mxu0 0
        %271 = vmatpush1.bf16.msra.mxu0 0
        %272 = vmatprep.subr.bf16.mxu0 0
        %273 = vmatpush1.bf16.msra.mxu0 0
        %274 = vmatprep.subr.bf16.mxu0 0
        %275 = vmatpush1.bf16.msra.mxu0 0
        %276 = vmatprep.subr.bf16.mxu0 0
        %277 = vmatpush1.bf16.msra.mxu0 0
        %278 = vmatprep.subr.bf16.mxu0 0
        %279 = vmatpush1.bf16.msra.mxu0 0
        %280 = vmatprep.subr.bf16.mxu0 0
        %281 = vmatpush1.bf16.msra.mxu0 0
        %282 = vmatprep.mubr.bf16.mxu0 0
        %283 = vmatmul.mubr.bf16.gmra.mrb[0].mxu0 %v245
        %v284 = vpop.f32.mrb[0].mxu0
        %v285 = vadd.f32 0.0, %v284
        %v286 = vpop.f32.mrb[0].mxu0
        %v287 = vpop.f32.mrb[0].mxu0
        %v288 = vadd.f32 0.0, %v287
        %v289 = vpop.f32.mrb[0].mxu0
        %290 = vmatprep.mubr.bf16.mxu0 0
        %291 = vmatmul.mubr.bf16.gmra.mrb[0].mxu0 %v248
        %v292 = vpop.f32.mrb[0].mxu0
        %v293 = vadd.f32 0.0, %v292
        %v294 = vpop.f32.mrb[0].mxu0
        %v295 = vpop.f32.mrb[0].mxu0
        %v296 = vpop.f32.mrb[0].mxu0
        %297 = vdwg.mxu0
        %v298 = vpack.c.bf16 %v288, %v285
        %v299 = vpack.c.bf16 %v293, %v293
        %v302 = vunpack.c.l.b16 %v233
        %v303 = vunpack.c.l.b16 %v234
        %v304 = vpack.c.b16 %v303, %v302
        %v307 = vsel %vm243, %v298, 0
        %v310 = vsel %vm243, %v299, 0
        %312 = vmatprep.subr.bf16.mxu0 0
        %313 = vmatpush1.bf16.msra.mxu0 %v304
        %314 = vmatprep.subr.bf16.mxu0 0
        %315 = vmatpush1.bf16.msra.mxu0 0
        %316 = vmatprep.subr.bf16.mxu0 0
        %317 = vmatpush1.bf16.msra.mxu0 0
        %318 = vmatprep.subr.bf16.mxu0 0
        %319 = vmatpush1.bf16.msra.mxu0 0
        %320 = vmatprep.subr.bf16.mxu0 0
        %321 = vmatpush1.bf16.msra.mxu0 0
        %322 = vmatprep.subr.bf16.mxu0 0
        %323 = vmatpush1.bf16.msra.mxu0 0
        %324 = vmatprep.subr.bf16.mxu0 0
        %325 = vmatpush1.bf16.msra.mxu0 0
        %326 = vmatprep.subr.bf16.mxu0 0
        %327 = vmatpush1.bf16.msra.mxu0 0
        %328 = vmatprep.subr.bf16.mxu0 0
        %329 = vmatpush1.bf16.msra.mxu0 0
        %330 = vmatprep.subr.bf16.mxu0 0
        %331 = vmatpush1.bf16.msra.mxu0 0
        %332 = vmatprep.subr.bf16.mxu0 0
        %333 = vmatpush1.bf16.msra.mxu0 0
        %334 = vmatprep.subr.bf16.mxu0 0
        %335 = vmatpush1.bf16.msra.mxu0 0
        %336 = vmatprep.subr.bf16.mxu0 0
        %337 = vmatpush1.bf16.msra.mxu0 0
        %338 = vmatprep.subr.bf16.mxu0 0
        %339 = vmatpush1.bf16.msra.mxu0 0
        %340 = vmatprep.subr.bf16.mxu0 0
        %341 = vmatpush1.bf16.msra.mxu0 0
        %342 = vmatprep.subr.bf16.mxu0 0
        %343 = vmatpush1.bf16.msra.mxu0 0
        %344 = vmatprep.mubr.bf16.mxu0 0
        %345 = vmatmul.mubr.bf16.gmra.mrb[0].mxu0 %v307
        %v346 = vpop.f32.mrb[0].mxu0
        %v347 = vadd.f32 0.0, %v346
        %v348 = vpop.f32.mrb[0].mxu0
        %v349 = vpop.f32.mrb[0].mxu0
        %v350 = vadd.f32 0.0, %v349
        %v351 = vpop.f32.mrb[0].mxu0
        %352 = vmatprep.mubr.bf16.mxu0 0
        %353 = vmatmul.mubr.bf16.gmra.mrb[0].mxu0 %v310
        %v354 = vpop.f32.mrb[0].mxu0
        %v355 = vadd.f32 0.0, %v354
        %v356 = vpop.f32.mrb[0].mxu0
        %v357 = vpop.f32.mrb[0].mxu0
        %v358 = vpop.f32.mrb[0].mxu0
        %359 = vdwg.mxu0
        %vm360 = vcmask 154624
        %361 = vst.msk [vmem:[%s218] sm:$0xff] %vm360, %v347
        %362 = vst.msk [vmem:[%s218 + $0x8] sm:$0xff] %vm360, %v350
        %vm363 = vcmask 149504
        %364 = vst.msk [vmem:[%s218 + $0x10] sm:$0x7] %vm363, %v355
        %s365 = sand.u32 %s115, 1
        %s366 = scalar_lea.sflag [#allocation4], %s365
        %s367 = sand.u32 %s115, 1
        %s368 = smul.addr %s367, 24
        %s369 = scalar_lea.vmem [#allocation5], %s368
        // Predicated region
        $region37: #{tpu_custom_call.1} parent=31 // pred_check
          %p370 = pneg %p125
        $region38: #{tpu_custom_call.1} parent=31 // pred_check_branch
          %372 = sbr.rel (%p370) target = $region40
        $region39: #{tpu_custom_call.1} parent=31 // pred_region
          %s373 = smul.u32 3, %s25
          %s375 = ssub.s32 384, 384
          %376 = vsyncadd %s366, %s375
          %s377 = smul.addr %s24, 3
          %s378 = sadd.s32 %s373, %s377
          %s379 = smul.addr %s378, 128
          %s380 = scalar_lea.hbm %s3, %s379
          %s381 = sshll.u32 %s369, 4
          %s382 = int_to_ptr.vmem [resolvable:$true] %s381
          %387 = dma.vmem_to_hbm [thread:$0]  %s382, 384, %s380, %s366, 128, 128, 8
        $region40: #{tpu_custom_call.1} parent=31 // pred_fallthru
          _
      $region32: #{tpu_custom_call.1} parent=5 // pred_fallthru
        _
      %p388 = scmp.le.s32.totalorder 2, %s15
      // Predicated region
      $region41: #{tpu_custom_call.1} parent=5 // pred_check
        %p389 = pneg %p388
      $region42: #{tpu_custom_call.1} parent=5 // pred_check_branch
        %391 = sbr.rel (%p389) target = $region44
      $region43: #{tpu_custom_call.1} parent=5 // pred_region
        %s392 = ssub.s32 %s15, 2
        // Predicated region
        $region45: #{tpu_custom_call.1} parent=43 // pred_check
          %p393 = pneg %p131
        $region46: #{tpu_custom_call.1} parent=43 // pred_check_branch
          %395 = sbr.rel (%p393) target = $region48
        $region47: #{tpu_custom_call.1} parent=43 // pred_region
          %s396 = sand.u32 %s116, 1
          %s397 = scalar_lea.sflag [#allocation4], %s396
          %s398 = sand.u32 %s116, 1
          %s399 = smul.addr %s398, 24
          %s400 = scalar_lea.vmem [#allocation5], %s399
          %401 = dma.done %s397, 384
        $region48: #{tpu_custom_call.1} parent=43 // pred_fallthru
          _
      $region44: #{tpu_custom_call.1} parent=5 // pred_fallthru
        _
    $region6: #{tpu_custom_call.1} parent=1 // loop_footer
      %s19 = sadd.s32 1, %s15
    $region7: #{tpu_custom_call.1} parent=1 // loop_footer_branch
      %14 = sbr.rel target = $region3
    $region8: #{tpu_custom_call.1} parent=1 // loop_exit
      _
    %402 = vsyncpa [#allocation3], 1
    %s403 = scalar_lea.sflag [#allocation3], 1
    %404 = vsyncpa %s403, 1
    %405 = vsyncpa [#allocation4], 1
    %s406 = scalar_lea.sflag [#allocation4], 1
    %407 = vsyncpa %s406, 1

// kernel: tpu_custom_call.1
$region0: #{tpu_custom_call.1}
  #allocation0 [shape = 'u32[]', space=smem, size = 0x4, offset = 0x4, fixed_abs, tag = 'smem constant byte address 0x4 - core index']
  #allocation1 [shape = 'u32[144,128]{1,0:T(1,128)}', space=vmem, size = 0x12000, scoped, tag = 'internal scratch']
  %s0 = inlined_call_operand.vmem [shape: bf16[19,16], index: 0, kind: input, shape index: {}]
  %s1 = inlined_call_operand.hbm [shape: f32[3,16,16], index: 1, kind: input, shape index: {}]
  %s2 = inlined_call_operand.vmem [shape: bf16[16,19], index: 2, kind: input, shape index: {}]
  %s3 = inlined_call_operand.hbm [shape: f32[3,19,19], index: 3, kind: output, shape index: {}]
  %s4 = sld [smem:[#allocation0]]
  $region49: #{tpu_custom_call.1} parent=0
    _
  %s6 = ssub.s32 1, %s4
  %s7 = scalar_select 0, %s6, %s4
  $region1: #{tpu_custom_call.1} parent=0
    #allocation2 [shape = 'u8[16384]{0}', space=vmem, size = 0x4000, scoped, tag = 'input window, operand 1']
    #allocation3 [shape = 's32[2]{0}', space=sflag, size = 0x8, scoped, tag = 'scoped memory for tpu_custom_call.1']
    #allocation4 [shape = 's32[2]{0}', space=sflag, size = 0x8, scoped, tag = 'scoped memory for tpu_custom_call.1']
    #allocation5 [shape = 'u8[24576]{0}', space=vmem, size = 0x6000, scoped, tag = 'output window, operand 0']
    %8 = vsyncpa [#allocation3], 0
    %s9 = scalar_lea.sflag [#allocation3], 1
    %10 = vsyncpa %s9, 0
    %11 = vsyncpa [#allocation4], 0
    %s12 = scalar_lea.sflag [#allocation4], 1
    %13 = vsyncpa %s12, 0
    loop: start=0, step=1, limit=5
    $region2: #{tpu_custom_call.1} parent=1 // loop_pre_header
      _
    $region3: #{tpu_custom_call.1} parent=1 // loop_header
      %s15 = sphi 0, %s19
      %p16 = scmp.ge.s32.totalorder %s15, 5
      %s22 = sphi 0, %s34
      %s23 = sphi 0, %s30
      %s24 = sphi 0, %s22
      %s25 = sphi 0, %s23
      %s26 = sphi 0, %s24
      %s27 = sphi 0, %s25
      %s37 = sphi 0, %s39
      %s40 = sphi 0, %s37
      %s41 = sphi 0, %s40
      %s57 = sphi 0, %s41
      %s63 = sphi 0, %s65
      %s66 = sphi 0, %s63
      %s67 = sphi 0, %s66
      %s83 = sphi 0, %s67
      %s87 = sphi 0, %s87
      %s89 = sphi 0, %s87
      %s90 = sphi 0, %s89
      %s104 = sphi 0, %s90
      %s112 = sphi 0, %s114
      %s115 = sphi 0, %s112
      %s116 = sphi 0, %s115
      %s132 = sphi 0, %s116
    $region4: #{tpu_custom_call.1} parent=1 // loop_header_branch
      %18 = sbr.rel (%p16) target = $region8
    $region5: #{tpu_custom_call.1} parent=1 // loop_body
      %s20 = ssub.s32 %s15, 1
      %s21 = ssub.s32 %s15, 2
      %s28 = sadd.s32 1, %s23
      %p29 = scmp.ge.s32.totalorder %s28, 1
      %s30 = scalar_select %p29, 0, %s28
      %s31 = sadd.s32 1, %s22
      %s32 = scalar_select %p29, %s31, %s22
      %p33 = scmp.ge.s32.totalorder %s32, 3
      %s34 = scalar_select %p33, 0, %s32
      %s35 = ssub.s32 %s23, %s30
      %p36 = scmp.eq.s32.totalorder %s35, 0
      %s38 = sadd.s32 %s37, 1
      %s39 = scalar_select %p36, %s37, %s38
      %p42 = pneg %p36
      %p43 = scmp.eq.s32.totalorder %s15, 2
      %p44 = por %p42, %p43
      %p45 = scmp.ne.s32.totalorder %s37, %s40
      %p46 = scmp.eq.s32.totalorder %s15, 0
      %p47 = por %p45, %p46
      %p48 = scmp.ne.s32.totalorder %s37, %s40
      %p49 = scmp.eq.s32.totalorder %s20, 2
      %p50 = por %p48, %p49
      %p51 = scmp.ne.s32.totalorder %s40, %s41
      %p52 = scmp.eq.s32.totalorder %s20, 0
      %p53 = por %p51, %p52
      %p54 = scmp.ne.s32.totalorder %s40, %s41
      %p55 = scmp.eq.s32.totalorder %s21, 2
      %p56 = por %p54, %p55
      %p58 = scmp.ne.s32.totalorder %s41, %s57
      %p59 = scmp.eq.s32.totalorder %s21, 0
      %p60 = por %p58, %p59
      %s61 = ssub.s32 %s22, %s34
      %p62 = scmp.eq.s32.totalorder %s61, 0
      %s64 = sadd.s32 %s63, 1
      %s65 = scalar_select %p62, %s63, %s64
      %p68 = pneg %p62
      %p69 = scmp.eq.s32.totalorder %s15, 2
      %p70 = por %p68, %p69
      %p71 = scmp.ne.s32.totalorder %s63, %s66
      %p72 = scmp.eq.s32.totalorder %s15, 0
      %p73 = por %p71, %p72
      %p74 = scmp.ne.s32.totalorder %s63, %s66
      %p75 = scmp.eq.s32.totalorder %s20, 2
      %p76 = por %p74, %p75
      %p77 = scmp.ne.s32.totalorder %s66, %s67
      %p78 = scmp.eq.s32.totalorder %s20, 0
      %p79 = por %p77, %p78
      %p80 = scmp.ne.s32.totalorder %s66, %s67
      %p81 = scmp.eq.s32.totalorder %s21, 2
      %p82 = por %p80, %p81
      %p84 = scmp.ne.s32.totalorder %s67, %s83
      %p85 = scmp.eq.s32.totalorder %s21, 0
      %p86 = por %p84, %p85
      %s88 = sadd.s32 %s87, 1
      %p91 = scmp.eq.s32.totalorder %s15, 2
      %p92 = scmp.ne.s32.totalorder %s87, %s89
      %p93 = scmp.eq.s32.totalorder %s15, 0
      %p94 = por %p92, %p93
      %p95 = scmp.ne.s32.totalorder %s87, %s89
      %p96 = scmp.eq.s32.totalorder %s20, 2
      %p97 = por %p95, %p96
      %p98 = scmp.ne.s32.totalorder %s89, %s90
      %p99 = scmp.eq.s32.totalorder %s20, 0
      %p100 = por %p98, %p99
      %p101 = scmp.ne.s32.totalorder %s89, %s90
      %p102 = scmp.eq.s32.totalorder %s21, 2
      %p103 = por %p101, %p102
      %p105 = scmp.ne.s32.totalorder %s90, %s104
      %p106 = scmp.eq.s32.totalorder %s21, 0
      %p107 = por %p105, %p106
      %s108 = ssub.s32 %s22, %s34
      %s109 = ssub.s32 %s23, %s30
      %s110 = sor.u32 %s108, %s109
      %p111 = scmp.eq.s32.totalorder %s110, 0
      %s113 = sadd.s32 %s112, 1
      %s114 = scalar_select %p111, %s112, %s113
      %p117 = pneg %p111
      %p118 = scmp.eq.s32.totalorder %s15, 2
      %p119 = por %p117, %p118
      %p120 = scmp.ne.s32.totalorder %s112, %s115
      %p121 = scmp.eq.s32.totalorder %s15, 0
      %p122 = por %p120, %p121
      %p123 = scmp.ne.s32.totalorder %s112, %s115
      %p124 = scmp.eq.s32.totalorder %s20, 2
      %p125 = por %p123, %p124
      %p126 = scmp.ne.s32.totalorder %s115, %s116
      %p127 = scmp.eq.s32.totalorder %s20, 0
      %p128 = por %p126, %p127
      %p129 = scmp.ne.s32.totalorder %s115, %s116
      %p130 = scmp.eq.s32.totalorder %s21, 2
      %p131 = por %p129, %p130
      %p133 = scmp.ne.s32.totalorder %s116, %s132
      %p134 = scmp.eq.s32.totalorder %s21, 0
      %p135 = por %p133, %p134
      %p136 = scmp.le.s32.totalorder 1, %s15
      %p137 = scmp.lt.s32.totalorder %s15, 4
      %p138 = pnand %p136, %p137
      %p139 = pneg %p138
      // Predicated region
      $region9: #{tpu_custom_call.1} parent=5 // pred_check
        _
      $region10: #{tpu_custom_call.1} parent=5 // pred_check_branch
        %141 = sbr.rel (%p138) target = $region12
      $region11: #{tpu_custom_call.1} parent=5 // pred_region
        %s142 = ssub.s32 %s15, 1
        // Predicated region
        $region13: #{tpu_custom_call.1} parent=11 // pred_check
          %p143 = pneg %p53
        $region14: #{tpu_custom_call.1} parent=11 // pred_check_branch
          %145 = sbr.rel (%p143) target = $region16
        $region15: #{tpu_custom_call.1} parent=11 // pred_region
          %s146 = smul.u32 3, %s25
          %p147 = scmp.lt.s32.totalorder %s146, 2
          %s148 = scalar_select %p147, %s146, 2
          %s149 = smul.addr %s148, 4
          %s150 = scalar_lea.vmem %s0, %s149
          %s151 = smul.u32 3, %s25
        $region16: #{tpu_custom_call.1} parent=11 // pred_fallthru
          _
        // Predicated region
        $region17: #{tpu_custom_call.1} parent=11 // pred_check
          %p152 = pneg %p100
        $region18: #{tpu_custom_call.1} parent=11 // pred_check_branch
          %154 = sbr.rel (%p152) target = $region20
        $region19: #{tpu_custom_call.1} parent=11 // pred_region
          _
        $region20: #{tpu_custom_call.1} parent=11 // pred_fallthru
          _
      $region12: #{tpu_custom_call.1} parent=5 // pred_fallthru
        _
      %p155 = scmp.lt.s32.totalorder %s15, 3
      // Predicated region
      $region21: #{tpu_custom_call.1} parent=5 // pred_check
        %p156 = pneg %p155
      $region22: #{tpu_custom_call.1} parent=5 // pred_check_branch
        %158 = sbr.rel (%p156) target = $region24
      $region23: #{tpu_custom_call.1} parent=5 // pred_region
        // Predicated region
        $region25: #{tpu_custom_call.1} parent=23 // pred_check
          %p159 = pneg %p73
        $region26: #{tpu_custom_call.1} parent=23 // pred_check_branch
          %161 = sbr.rel (%p159) target = $region28
        $region27: #{tpu_custom_call.1} parent=23 // pred_region
          %s162 = sand.u32 %s63, 1
          %s163 = scalar_lea.sflag [#allocation3], %s162
          %s164 = sand.u32 %s63, 1
          %s165 = smul.addr %s164, 16
          %s166 = scalar_lea.vmem [#allocation2], %s165
          %s168 = ssub.s32 256, 256
          %169 = vsyncadd %s163, %s168
          %s170 = smul.addr %s22, 2
          %s171 = smul.addr %s170, 128
          %s172 = scalar_lea.hbm %s1, %s171
          %s173 = sshll.u32 %s166, 4
          %s174 = int_to_ptr.vmem [resolvable:$true] %s173
          %179 = dma.hbm_to_vmem [thread:$0]  %s172, 256, %s174, %s163, 128, 128, 8
        $region28: #{tpu_custom_call.1} parent=23 // pred_fallthru
          _
      $region24: #{tpu_custom_call.1} parent=5 // pred_fallthru
        _
      %p180 = scmp.le.s32.totalorder 1, %s15
      %p181 = scmp.lt.s32.totalorder %s15, 4
      %p182 = pnand %p180, %p181
      %p183 = pneg %p182
      // Predicated region
      $region29: #{tpu_custom_call.1} parent=5 // pred_check
        _
      $region30: #{tpu_custom_call.1} parent=5 // pred_check_branch
        %185 = sbr.rel (%p182) target = $region32
      $region31: #{tpu_custom_call.1} parent=5 // pred_region
        %s186 = ssub.s32 %s15, 1
        %s187 = sand.u32 %s66, 1
        %s188 = scalar_lea.sflag [#allocation3], %s187
        %s189 = sand.u32 %s66, 1
        %s190 = smul.addr %s189, 16
        %s191 = scalar_lea.vmem [#allocation2], %s190
        // Predicated region
        $region33: #{tpu_custom_call.1} parent=31 // pred_check
          %p192 = pneg %p79
        $region34: #{tpu_custom_call.1} parent=31 // pred_check_branch
          %194 = sbr.rel (%p192) target = $region36
        $region35: #{tpu_custom_call.1} parent=31 // pred_region
          %195 = dma.done %s188, 256
        $region36: #{tpu_custom_call.1} parent=31 // pred_fallthru
          _
        %s196 = smul.u32 3, %s25
        %p197 = scmp.lt.s32.totalorder %s196, 2
        %s198 = scalar_select %p197, %s196, 2
        %s199 = smul.addr %s198, 4
        %s200 = scalar_lea.vmem %s0, %s199
        %p201 = pneg %p53
        %p202 = pneg %p50
        %s203 = sand.u32 %s66, 1
        %s204 = scalar_lea.sflag [#allocation3], %s203
        %s205 = sand.u32 %s66, 1
        %s206 = smul.addr %s205, 16
        %s207 = scalar_lea.vmem [#allocation2], %s206
        %p208 = pneg %p79
        %p209 = pneg %p76
        %p210 = pneg %p100
        %p211 = pneg %p97
        %p212 = pneg %p128
        %p213 = pneg %p125
        %s214 = sand.u32 %s115, 1
        %s215 = scalar_lea.sflag [#allocation4], %s214
        %s216 = sand.u32 %s115, 1
        %s217 = smul.addr %s216, 24
        %s218 = scalar_lea.vmem [#allocation5], %s217
        %s219 = smul.u32 3, %s25
        %p220 = scmp.lt.s32.totalorder %s219, 2
        %s221 = scalar_select %p220, %s219, 2
        %s222 = smul.addr %s221, 4
        %s223 = scalar_lea.vmem %s0, %s222
        %s224 = smul.u32 3, %s25
        %s225 = smul.u32 3, %s25
        %v227 = vld [vmem:[%s191] sm:$0xff]
        %v228 = vld [vmem:[%s191 + $0x8] sm:$0xff]
        %v229 = vpack.c.bf16 %v228, %v227
        %v230 = vld [vmem:[%s223] sm:$0xf]
        %v231 = vld [vmem:[%s223 + $0x4] sm:$0xf]
        %v232 = vld [vmem:[%s223 + $0x8] sm:$0x3]
        %v233 = vld [vmem:[%s2] sm:$0xf]
        %v234 = vld [vmem:[%s2 + $0x4] sm:$0xf]
        %v238 = vunpack.c.l.b16 %v230
        %v239 = vunpack.c.l.b16 %v231
        %v240 = vunpack.c.l.b16 %v232
        %v241 = vpack.c.b16 %v239, %v238
        %v242 = vpack.c.b16 %v240, %v240
        %vm243 = vcmask 130048
        %v245 = vsel %vm243, %v241, 0
        %v248 = vsel %vm243, %v242, 0
        %250 = vmatprep.subr.bf16.mxu0 0
        %251 = vmatpush1.bf16.msra.mxu0 %v229
        %252 = vmatprep.subr.bf16.mxu0 0
        %253 = vmatpush1.bf16.msra.mxu0 0
        %254 = vmatprep.subr.bf16.mxu0 0
        %255 = vmatpush1.bf16.msra.mxu0 0
        %256 = vmatprep.subr.bf16.mxu0 0
        %257 = vmatpush1.bf16.msra.mxu0 0
        %258 = vmatprep.subr.bf16.mxu0 0
        %259 = vmatpush1.bf16.msra.mxu0 0
        %260 = vmatprep.subr.bf16.mxu0 0
        %261 = vmatpush1.bf16.msra.mxu0 0
        %262 = vmatprep.subr.bf16.mxu0 0
        %263 = vmatpush1.bf16.msra.mxu0 0
        %264 = vmatprep.subr.bf16.mxu0 0
        %265 = vmatpush1.bf16.msra.mxu0 0
        %266 = vmatprep.subr.bf16.mxu0 0
        %267 = vmatpush1.bf16.msra.mxu0 0
        %268 = vmatprep.subr.bf16.mxu0 0
        %269 = vmatpush1.bf16.msra.mxu0 0
        %270 = vmatprep.subr.bf16.mxu0 0
        %271 = vmatpush1.bf16.msra.mxu0 0
        %272 = vmatprep.subr.bf16.mxu0 0
        %273 = vmatpush1.bf16.msra.mxu0 0
        %274 = vmatprep.subr.bf16.mxu0 0
        %275 = vmatpush1.bf16.msra.mxu0 0
        %276 = vmatprep.subr.bf16.mxu0 0
        %277 = vmatpush1.bf16.msra.mxu0 0
        %278 = vmatprep.subr.bf16.mxu0 0
        %279 = vmatpush1.bf16.msra.mxu0 0
        %280 = vmatprep.subr.bf16.mxu0 0
        %281 = vmatpush1.bf16.msra.mxu0 0
        %282 = vmatprep.mubr.bf16.mxu0 0
        %283 = vmatmul.mubr.bf16.gmra.mrb[0].mxu0 %v245
        %v284 = vpop.f32.mrb[0].mxu0
        %v285 = vadd.f32 0.0, %v284
        %v286 = vpop.f32.mrb[0].mxu0
        %v287 = vpop.f32.mrb[0].mxu0
        %v288 = vadd.f32 0.0, %v287
        %v289 = vpop.f32.mrb[0].mxu0
        %290 = vmatprep.mubr.bf16.mxu0 0
        %291 = vmatmul.mubr.bf16.gmra.mrb[0].mxu0 %v248
        %v292 = vpop.f32.mrb[0].mxu0
        %v293 = vadd.f32 0.0, %v292
        %v294 = vpop.f32.mrb[0].mxu0
        %v295 = vpop.f32.mrb[0].mxu0
        %v296 = vpop.f32.mrb[0].mxu0
        %297 = vdwg.mxu0
        %v298 = vpack.c.bf16 %v288, %v285
        %v299 = vpack.c.bf16 %v293, %v293
        %v302 = vunpack.c.l.b16 %v233
        %v303 = vunpack.c.l.b16 %v234
        %v304 = vpack.c.b16 %v303, %v302
        %v307 = vsel %vm243, %v298, 0
        %v310 = vsel %vm243, %v299, 0
        %312 = vmatprep.subr.bf16.mxu0 0
        %313 = vmatpush1.bf16.msra.mxu0 %v304
        %314 = vmatprep.subr.bf16.mxu0 0
        %315 = vmatpush1.bf16.msra.mxu0 0
        %316 = vmatprep.subr.bf16.mxu0 0
        %317 = vmatpush1.bf16.msra.mxu0 0
        %318 = vmatprep.subr.bf16.mxu0 0
        %319 = vmatpush1.bf16.msra.mxu0 0
        %320 = vmatprep.subr.bf16.mxu0 0
        %321 = vmatpush1.bf16.msra.mxu0 0
        %322 = vmatprep.subr.bf16.mxu0 0
        %323 = vmatpush1.bf16.msra.mxu0 0
        %324 = vmatprep.subr.bf16.mxu0 0
        %325 = vmatpush1.bf16.msra.mxu0 0
        %326 = vmatprep.subr.bf16.mxu0 0
        %327 = vmatpush1.bf16.msra.mxu0 0
        %328 = vmatprep.subr.bf16.mxu0 0
        %329 = vmatpush1.bf16.msra.mxu0 0
        %330 = vmatprep.subr.bf16.mxu0 0
        %331 = vmatpush1.bf16.msra.mxu0 0
        %332 = vmatprep.subr.bf16.mxu0 0
        %333 = vmatpush1.bf16.msra.mxu0 0
        %334 = vmatprep.subr.bf16.mxu0 0
        %335 = vmatpush1.bf16.msra.mxu0 0
        %336 = vmatprep.subr.bf16.mxu0 0
        %337 = vmatpush1.bf16.msra.mxu0 0
        %338 = vmatprep.subr.bf16.mxu0 0
        %339 = vmatpush1.bf16.msra.mxu0 0
        %340 = vmatprep.subr.bf16.mxu0 0
        %341 = vmatpush1.bf16.msra.mxu0 0
        %342 = vmatprep.subr.bf16.mxu0 0
        %343 = vmatpush1.bf16.msra.mxu0 0
        %344 = vmatprep.mubr.bf16.mxu0 0
        %345 = vmatmul.mubr.bf16.gmra.mrb[0].mxu0 %v307
        %v346 = vpop.f32.mrb[0].mxu0
        %v347 = vadd.f32 0.0, %v346
        %v348 = vpop.f32.mrb[0].mxu0
        %v349 = vpop.f32.mrb[0].mxu0
        %v350 = vadd.f32 0.0, %v349
        %v351 = vpop.f32.mrb[0].mxu0
        %352 = vmatprep.mubr.bf16.mxu0 0
        %353 = vmatmul.mubr.bf16.gmra.mrb[0].mxu0 %v310
        %v354 = vpop.f32.mrb[0].mxu0
        %v355 = vadd.f32 0.0, %v354
        %v356 = vpop.f32.mrb[0].mxu0
        %v357 = vpop.f32.mrb[0].mxu0
        %v358 = vpop.f32.mrb[0].mxu0
        %359 = vdwg.mxu0
        %vm360 = vcmask 154624
        %361 = vst.msk [vmem:[%s218] sm:$0xff] %vm360, %v347
        %362 = vst.msk [vmem:[%s218 + $0x8] sm:$0xff] %vm360, %v350
        %vm363 = vcmask 149504
        %364 = vst.msk [vmem:[%s218 + $0x10] sm:$0x7] %vm363, %v355
        %s365 = sand.u32 %s115, 1
        %s366 = scalar_lea.sflag [#allocation4], %s365
        %s367 = sand.u32 %s115, 1
        %s368 = smul.addr %s367, 24
        %s369 = scalar_lea.vmem [#allocation5], %s368
        // Predicated region
        $region37: #{tpu_custom_call.1} parent=31 // pred_check
          %p370 = pneg %p125
        $region38: #{tpu_custom_call.1} parent=31 // pred_check_branch
          %372 = sbr.rel (%p370) target = $region40
        $region39: #{tpu_custom_call.1} parent=31 // pred_region
          %s373 = smul.u32 3, %s25
          %s375 = ssub.s32 384, 384
          %376 = vsyncadd %s366, %s375
          %s377 = smul.addr %s24, 3
          %s378 = sadd.s32 %s373, %s377
          %s379 = smul.addr %s378, 128
          %s380 = scalar_lea.hbm %s3, %s379
          %s381 = sshll.u32 %s369, 4
          %s382 = int_to_ptr.vmem [resolvable:$true] %s381
          %387 = dma.vmem_to_hbm [thread:$0]  %s382, 384, %s380, %s366, 128, 128, 8
        $region40: #{tpu_custom_call.1} parent=31 // pred_fallthru
          _
      $region32: #{tpu_custom_call.1} parent=5 // pred_fallthru
        _
      %p388 = scmp.le.s32.totalorder 2, %s15
      // Predicated region
      $region41: #{tpu_custom_call.1} parent=5 // pred_check
        %p389 = pneg %p388
      $region42: #{tpu_custom_call.1} parent=5 // pred_check_branch
        %391 = sbr.rel (%p389) target = $region44
      $region43: #{tpu_custom_call.1} parent=5 // pred_region
        %s392 = ssub.s32 %s15, 2
        // Predicated region
        $region45: #{tpu_custom_call.1} parent=43 // pred_check
          %p393 = pneg %p131
        $region46: #{tpu_custom_call.1} parent=43 // pred_check_branch
          %395 = sbr.rel (%p393) target = $region48
        $region47: #{tpu_custom_call.1} parent=43 // pred_region
          %s396 = sand.u32 %s116, 1
          %s397 = scalar_lea.sflag [#allocation4], %s396
          %s398 = sand.u32 %s116, 1
          %s399 = smul.addr %s398, 24
          %s400 = scalar_lea.vmem [#allocation5], %s399
          %401 = dma.done %s397, 384
        $region48: #{tpu_custom_call.1} parent=43 // pred_fallthru
          _
      $region44: #{tpu_custom_call.1} parent=5 // pred_fallthru
        _
    $region6: #{tpu_custom_call.1} parent=1 // loop_footer
      %s19 = sadd.s32 1, %s15
    $region7: #{tpu_custom_call.1} parent=1 // loop_footer_branch
      %14 = sbr.rel target = $region3
    $region8: #{tpu_custom_call.1} parent=1 // loop_exit
      _
    %402 = vsyncpa [#allocation3], 1
    %s403 = scalar_lea.sflag [#allocation3], 1
    %404 = vsyncpa %s403, 1
    %405 = vsyncpa [#allocation4], 1
    %s406 = scalar_lea.sflag [#allocation4], 1
    %407 = vsyncpa %s406, 1

</llo_original>
